<compile_context>
chip_gen: v7x
topology: tpu7x:2x2x1
jax: 0.10.0
libtpu: 0.0.40
codegen_flags: <defaults>
</compile_context>

<pallas_src>
import jax
import jax.numpy as jnp
from jax.experimental import pallas as pl
from jax.experimental.pallas import tpu as pltpu

BN_EPS = 1e-5
_VMEM_LIMIT = 32 * 1024 * 1024  # explicit scoped-VMEM limit, safe on v5e/v6e/v7x


def _stats_kernel(w_ref, x_ref, sum_ref, ssq_ref):
    """Accumulate per-class sum(y) and sum(y*y) with y = W @ x (no bias)."""
    @pl.when((pl.program_id(0) == 0) & (pl.program_id(1) == 0))
    def _():
        sum_ref[...] = jnp.zeros_like(sum_ref)
        ssq_ref[...] = jnp.zeros_like(ssq_ref)

    x = x_ref[...].astype(jnp.float32)            # (C_in, TM)  lane-dense
    w = w_ref[...].astype(jnp.float32)            # (classes, C_in)
    c_in = x_ref.shape[0]

    # y = W @ x via C_in broadcasted VPU FMAs (K is tiny -> skip the MXU).
    y = w[:, 0:1] * x[0:1, :]
    for k in range(1, c_in):
        y = y + w[:, k:k + 1] * x[k:k + 1, :]     # (classes, TM)

    sum_ref[...] += jnp.sum(y, axis=1, keepdims=True)   # XLU lane-reduce
    ssq_ref[...] += jnp.sum(y * y, axis=1, keepdims=True)


def _apply_kernel(wf_ref, bf_ref, alpha_ref, x_ref, o_ref):
    """out = PReLU(w_fold @ x + b_fold); conv + BN folded into one affine."""
    x = x_ref[...].astype(jnp.float32)            # (C_in, TM)
    wf = wf_ref[...]                              # (classes, C_in)
    c_in = x_ref.shape[0]

    y = wf[:, 0:1] * x[0:1, :]
    for k in range(1, c_in):
        y = y + wf[:, k:k + 1] * x[k:k + 1, :]    # (classes, TM)
    y = y + bf_ref[...]                           # (classes, 1) lane-broadcast

    o_ref[...] = jnp.where(y > 0, y, alpha_ref[...] * y).astype(o_ref.dtype)


def _pick_spatial_tile(hw, cap=2048):
    """Largest lane-dense tile (multiple of 128) dividing hw, capped for VMEM."""
    if hw <= cap:
        return hw
    t = (cap // 128) * 128
    while t >= 128:
        if hw % t == 0:
            return t
        t -= 128
    return hw  # fallback: whole spatial extent in one block


def vnet_out_single_block(x_nchw, conv_w, conv_b, bn_gamma, bn_beta,
                          prelu_alpha, *, eps=BN_EPS, tile_cap=2048):
    """x_nchw: (N, C_in, H, W); conv_w: (classes, C_in, 1, 1); rest: (classes,)."""
    del conv_b  # cancels exactly under training-mode BN mean subtraction
    N, C_in, H, W = x_nchw.shape
    classes = conv_w.shape[0]
    HW = H * W
    M = N * HW
    TM = _pick_spatial_tile(HW, tile_cap)
    n_tiles = HW // TM

    # NCHW -> (N, C, H*W): pure reshape, no transpose, no extra HBM round-trip.
    x3 = x_nchw.reshape(N, C_in, HW)
    w_mat = conv_w.reshape(classes, C_in).astype(jnp.float32)

    # ---- pass 1: per-class batch statistics of y = W x (tiled, pipelined) ----
    sum_y, ssq_y = pl.pallas_call(
        _stats_kernel,
        out_shape=(jax.ShapeDtypeStruct((classes, 1), jnp.float32),
                   jax.ShapeDtypeStruct((classes, 1), jnp.float32)),
        grid=(N, n_tiles),
        in_specs=[
            pl.BlockSpec((classes, C_in), lambda n, m: (0, 0)),
            pl.BlockSpec((None, C_in, TM), lambda n, m: (n, 0, m)),
        ],
        out_specs=(pl.BlockSpec((classes, 1), lambda n, m: (0, 0)),
                   pl.BlockSpec((classes, 1), lambda n, m: (0, 0))),
        compiler_params=pltpu.CompilerParams(
            dimension_semantics=("arbitrary", "arbitrary"),
            vmem_limit_bytes=_VMEM_LIMIT),
    )(w_mat, x3)

    # ---- tiny host-side fold: conv + BN(batch stats) -> single affine ----
    mean = sum_y[:, 0] / M                                # E[W x] per class
    var = ssq_y[:, 0] / M - mean * mean                   # biased variance
    scale = bn_gamma.astype(jnp.float32) * jax.lax.rsqrt(var + eps)
    w_fold = scale[:, None] * w_mat                       # (classes, C_in)
    b_fold = bn_beta.astype(jnp.float32) - mean * scale   # (classes,)

    # ---- pass 2: apply folded affine + PReLU, tile-by-tile ----
    out3 = pl.pallas_call(
        _apply_kernel,
        out_shape=jax.ShapeDtypeStruct((N, classes, HW), jnp.float32),
        grid=(N, n_tiles),
        in_specs=[
            pl.BlockSpec((classes, C_in), lambda n, m: (0, 0)),
            pl.BlockSpec((classes, 1), lambda n, m: (0, 0)),
            pl.BlockSpec((classes, 1), lambda n, m: (0, 0)),
            pl.BlockSpec((None, C_in, TM), lambda n, m: (n, 0, m)),
        ],
        out_specs=pl.BlockSpec((None, classes, TM), lambda n, m: (n, 0, m)),
        compiler_params=pltpu.CompilerParams(
            dimension_semantics=("parallel", "parallel"),
            vmem_limit_bytes=_VMEM_LIMIT),
    )(w_fold, b_fold.reshape(classes, 1),
      prelu_alpha.reshape(classes, 1).astype(jnp.float32), x3)

    # (N, classes, H*W) -> NCHW: pure reshape.
    return out3.reshape(N, classes, H, W)


def _reference(x_nchw, conv_w, conv_b, bn_gamma, bn_beta, prelu_alpha):
    """Pure-JAX reference mirroring the PyTorch forward (training-mode BN)."""
    N, C_in, H, W = x_nchw.shape
    classes = conv_w.shape[0]
    x = jnp.transpose(x_nchw, (0, 2, 3, 1)).reshape(-1, C_in)
    y = x @ conv_w.reshape(classes, C_in).T + conv_b
    mean = y.mean(axis=0, keepdims=True)
    var = ((y - mean) ** 2).mean(axis=0, keepdims=True)
    y = (y - mean) / jnp.sqrt(var + BN_EPS) * bn_gamma + bn_beta
    y = jnp.where(y > 0, y, prelu_alpha * y)
    return jnp.transpose(y.reshape(N, H, W, classes), (0, 3, 1, 2))


if __name__ == "__main__":
    N, C_in, H, W = 2, 4, 16, 16
    classes = 4

    key = jax.random.PRNGKey(0)
    kx, kw, kb = jax.random.split(key, 3)

    x = jax.random.normal(kx, (N, C_in, H, W), dtype=jnp.float32)

    # Deterministic parameter init (synthetic; shapes match nn.Conv2d / BN / PReLU)
    conv_w = jax.random.normal(kw, (classes, C_in, 1, 1), dtype=jnp.float32) * 0.1
    conv_b = jax.random.normal(kb, (classes,), dtype=jnp.float32) * 0.1
    bn_gamma = jnp.ones((classes,), dtype=jnp.float32)        # BatchNorm2d default weight
    bn_beta = jnp.zeros((classes,), dtype=jnp.float32)        # BatchNorm2d default bias
    prelu_alpha = jnp.full((classes,), 0.25, dtype=jnp.float32)  # PReLU default init

    out = vnet_out_single_block(x, conv_w, conv_b, bn_gamma, bn_beta, prelu_alpha)
    out = jax.block_until_ready(out)

    ref = _reference(x, conv_w, conv_b, bn_gamma, bn_beta, prelu_alpha)
    assert out.shape == (N, classes, H, W)
    assert jnp.allclose(out, ref, atol=1e-4, rtol=1e-4)

    print("KERNEL_OK")
</pallas_src>

<mosaic_0001>
module attributes {stable_mosaic.version = 11 : i64} {
  func.func @_stats_kernel(%arg0: i32, %arg1: i32, %arg2: memref<4x4xf32, #tpu.memory_space<vmem>>, %arg3: memref<1x4x256xf32, #tpu.memory_space<vmem>>, %arg4: memref<4x1xf32, #tpu.memory_space<vmem>>, %arg5: memref<4x1xf32, #tpu.memory_space<vmem>>) attributes {dimension_semantics = [#tpu.dimension_semantics<arbitrary>, #tpu.dimension_semantics<arbitrary>], iteration_bounds = array<i64: 2, 1>, scalar_prefetch = 0 : i64, scratch_operands = 0 : i64, tpu.core_type = #tpu.core_type<tc>, window_params = [{pipeline_mode = #tpu.pipeline_mode<synchronous>, transform_indices = @transform_0, window_bounds = array<i64: 4, 4>}, {transform_indices = @transform_1, window_bounds = array<i64: 1, 4, 256>}, {pipeline_mode = #tpu.pipeline_mode<synchronous>, transform_indices = @transform_2, window_bounds = array<i64: 4, 1>}, {pipeline_mode = #tpu.pipeline_mode<synchronous>, transform_indices = @transform_3, window_bounds = array<i64: 4, 1>}]} {
    %c0_i32 = arith.constant 0 : i32
    %0 = arith.cmpi eq, %arg0, %c0_i32 : i32
    %c0_i32_0 = arith.constant 0 : i32
    %1 = arith.cmpi eq, %arg1, %c0_i32_0 : i32
    %2 = arith.andi %0, %1 : i1
    %3 = arith.extui %2 : i1 to i32
    %c0_i32_1 = arith.constant 0 : i32
    %4 = arith.cmpi ne, %3, %c0_i32_1 : i32
    scf.if %4 {
      %cst_15 = arith.constant 0.000000e+00 : f32
      %42 = vector.broadcast %cst_15 : f32 to vector<4x1xf32>
      %c0_16 = arith.constant 0 : index
      %c0_17 = arith.constant 0 : index
      %43 = vector.load %arg4[%c0_16, %c0_17] : memref<4x1xf32, #tpu.memory_space<vmem>>, vector<4x1xf32>
      tpu.vector_store %arg4[%c0_16, %c0_17], %42 {strides = array<i32>} : memref<4x1xf32, #tpu.memory_space<vmem>>, vector<4x1xf32>,
      %cst_18 = arith.constant 0.000000e+00 : f32
      %44 = vector.broadcast %cst_18 : f32 to vector<4x1xf32>
      %c0_19 = arith.constant 0 : index
      %c0_20 = arith.constant 0 : index
      %45 = vector.load %arg5[%c0_19, %c0_20] : memref<4x1xf32, #tpu.memory_space<vmem>>, vector<4x1xf32>
      tpu.vector_store %arg5[%c0_19, %c0_20], %44 {strides = array<i32>} : memref<4x1xf32, #tpu.memory_space<vmem>>, vector<4x1xf32>,
    } else {
    }
    %c0 = arith.constant 0 : index
    %c0_2 = arith.constant 0 : index
    %c0_3 = arith.constant 0 : index
    %5 = vector.load %arg3[%c0, %c0_2, %c0_3] : memref<1x4x256xf32, #tpu.memory_space<vmem>>, vector<1x4x256xf32>
    %6 = vector.shape_cast %5 : vector<1x4x256xf32> to vector<4x256xf32>
    %c0_4 = arith.constant 0 : index
    %c0_5 = arith.constant 0 : index
    %7 = vector.load %arg2[%c0_4, %c0_5] : memref<4x4xf32, #tpu.memory_space<vmem>>, vector<4x4xf32>
    %8 = vector.extract_strided_slice %7 {offsets = [0, 0], sizes = [4, 1], strides = [1, 1]} : vector<4x4xf32> to vector<4x1xf32>
    %9 = vector.extract_strided_slice %6 {offsets = [0, 0], sizes = [1, 256], strides = [1, 1]} : vector<4x256xf32> to vector<1x256xf32>
    %10 = vector.broadcast %8 : vector<4x1xf32> to vector<4x256xf32>
    %11 = vector.broadcast %9 : vector<1x256xf32> to vector<4x256xf32>
    %12 = arith.mulf %10, %11 : vector<4x256xf32>
    %13 = vector.extract_strided_slice %7 {offsets = [0, 1], sizes = [4, 1], strides = [1, 1]} : vector<4x4xf32> to vector<4x1xf32>
    %14 = vector.extract_strided_slice %6 {offsets = [1, 0], sizes = [1, 256], strides = [1, 1]} : vector<4x256xf32> to vector<1x256xf32>
    %15 = vector.broadcast %13 : vector<4x1xf32> to vector<4x256xf32>
    %16 = vector.broadcast %14 : vector<1x256xf32> to vector<4x256xf32>
    %17 = arith.mulf %15, %16 : vector<4x256xf32>
    %18 = arith.addf %12, %17 : vector<4x256xf32>
    %19 = vector.extract_strided_slice %7 {offsets = [0, 2], sizes = [4, 1], strides = [1, 1]} : vector<4x4xf32> to vector<4x1xf32>
    %20 = vector.extract_strided_slice %6 {offsets = [2, 0], sizes = [1, 256], strides = [1, 1]} : vector<4x256xf32> to vector<1x256xf32>
    %21 = vector.broadcast %19 : vector<4x1xf32> to vector<4x256xf32>
    %22 = vector.broadcast %20 : vector<1x256xf32> to vector<4x256xf32>
    %23 = arith.mulf %21, %22 : vector<4x256xf32>
    %24 = arith.addf %18, %23 : vector<4x256xf32>
    %25 = vector.extract_strided_slice %7 {offsets = [0, 3], sizes = [4, 1], strides = [1, 1]} : vector<4x4xf32> to vector<4x1xf32>
    %26 = vector.extract_strided_slice %6 {offsets = [3, 0], sizes = [1, 256], strides = [1, 1]} : vector<4x256xf32> to vector<1x256xf32>
    %27 = vector.broadcast %25 : vector<4x1xf32> to vector<4x256xf32>
    %28 = vector.broadcast %26 : vector<1x256xf32> to vector<4x256xf32>
    %29 = arith.mulf %27, %28 : vector<4x256xf32>
    %30 = arith.addf %24, %29 : vector<4x256xf32>
    %c0_6 = arith.constant 0 : index
    %c0_7 = arith.constant 0 : index
    %31 = vector.load %arg4[%c0_6, %c0_7] : memref<4x1xf32, #tpu.memory_space<vmem>>, vector<4x1xf32>
    %cst = arith.constant dense<0.000000e+00> : vector<4xf32>
    %32 = vector.multi_reduction <add>, %30, %cst [1] : vector<4x256xf32> to vector<4xf32>
    %33 = vector.shape_cast %32 : vector<4xf32> to vector<4x1xf32>
    %34 = arith.addf %31, %33 : vector<4x1xf32>
    %c0_8 = arith.constant 0 : index
    %c0_9 = arith.constant 0 : index
    %35 = vector.load %arg4[%c0_8, %c0_9] : memref<4x1xf32, #tpu.memory_space<vmem>>, vector<4x1xf32>
    tpu.vector_store %arg4[%c0_8, %c0_9], %34 {strides = array<i32>} : memref<4x1xf32, #tpu.memory_space<vmem>>, vector<4x1xf32>,
    %c0_10 = arith.constant 0 : index
    %c0_11 = arith.constant 0 : index
    %36 = vector.load %arg5[%c0_10, %c0_11] : memref<4x1xf32, #tpu.memory_space<vmem>>, vector<4x1xf32>
    %37 = arith.mulf %30, %30 : vector<4x256xf32>
    %cst_12 = arith.constant dense<0.000000e+00> : vector<4xf32>
    %38 = vector.multi_reduction <add>, %37, %cst_12 [1] : vector<4x256xf32> to vector<4xf32>
    %39 = vector.shape_cast %38 : vector<4xf32> to vector<4x1xf32>
    %40 = arith.addf %36, %39 : vector<4x1xf32>
    %c0_13 = arith.constant 0 : index
    %c0_14 = arith.constant 0 : index
    %41 = vector.load %arg5[%c0_13, %c0_14] : memref<4x1xf32, #tpu.memory_space<vmem>>, vector<4x1xf32>
    tpu.vector_store %arg5[%c0_13, %c0_14], %40 {strides = array<i32>} : memref<4x1xf32, #tpu.memory_space<vmem>>, vector<4x1xf32>,
    return
  }
  func.func @transform_0(%arg0: i32, %arg1: i32) -> (i32, i32) {
    %c0_i32 = arith.constant 0 : i32
    %c0_i32_0 = arith.constant 0 : i32
    %c0_i32_1 = arith.constant 0 : i32
    return %c0_i32, %c0_i32_0 : i32, i32
  }
  func.func @transform_1(%arg0: i32, %arg1: i32) -> (i32, i32, i32) {
    %c0_i32 = arith.constant 0 : i32
    %c0_i32_0 = arith.constant 0 : i32
    return %arg0, %c0_i32, %arg1 : i32, i32, i32
  }
  func.func @transform_2(%arg0: i32, %arg1: i32) -> (i32, i32) {
    %c0_i32 = arith.constant 0 : i32
    %c0_i32_0 = arith.constant 0 : i32
    %c0_i32_1 = arith.constant 0 : i32
    return %c0_i32, %c0_i32_0 : i32, i32
  }
  func.func @transform_3(%arg0: i32, %arg1: i32) -> (i32, i32) {
    %c0_i32 = arith.constant 0 : i32
    %c0_i32_0 = arith.constant 0 : i32
    %c0_i32_1 = arith.constant 0 : i32
    return %c0_i32, %c0_i32_0 : i32, i32
  }
}

</mosaic_0001>

<llo_original>
// kernel: tpu_custom_call.1
$region0: #{tpu_custom_call.1}
  #allocation0 [shape = 'u32[]', space=smem, size = 0x4, offset = 0x4, fixed_abs, tag = 'smem constant byte address 0x4 - core index']
  #allocation1 [shape = 'u32[144,128]{1,0:T(1,128)}', space=vmem, size = 0x12000, scoped, tag = 'internal scratch']
  %s0 = inlined_call_operand.hbm [shape: f32[4,4], index: 0, kind: input, shape index: {}]
  %s1 = inlined_call_operand.hbm [shape: f32[2,4,256], index: 1, kind: input, shape index: {}]
  %s2 = inlined_call_operand.vmem [shape: f32[4,1], index: 2, kind: output, shape index: {0}]
  %s3 = inlined_call_operand.vmem [shape: f32[4,1], index: 3, kind: output, shape index: {1}]
  %4 = xla_tuple %s2, %s3
  %s5 = sld [smem:[#allocation0]]
  $region61: #{tpu_custom_call.1} parent=0
    _
  %s7 = ssub.s32 1, %s5
  %s8 = scalar_select 0, %s7, %s5
  $region1: #{tpu_custom_call.1} parent=0
    #allocation2 [shape = 'u8[2048]{0}', space=vmem, size = 0x800, scoped, tag = 'input window, operand 0, single buffered']
    #allocation3 [shape = 's32[2]{0}', space=sflag, size = 0x8, scoped, tag = 'scoped memory for tpu_custom_call.1']
    #allocation4 [shape = 'u8[8192]{0}', space=vmem, size = 0x2000, scoped, tag = 'input window, operand 1']
    #allocation5 [shape = 's32[2]{0}', space=sflag, size = 0x8, scoped, tag = 'scoped memory for tpu_custom_call.1']
    %9 = vsyncpa [#allocation3], 0
    %10 = vsyncpa [#allocation5], 0
    %s11 = scalar_lea.sflag [#allocation5], 1
    %12 = vsyncpa %s11, 0
    loop: start=0, step=1, limit=4
    $region2: #{tpu_custom_call.1} parent=1 // loop_pre_header
      _
    $region3: #{tpu_custom_call.1} parent=1 // loop_header
      %s14 = sphi 0, %s18
      %p15 = scmp.ge.s32.totalorder %s14, 4
      %s21 = sphi 0, %s33
      %s22 = sphi 0, %s29
      %s23 = sphi 0, %s21
      %s24 = sphi 0, %s22
      %s25 = sphi 0, %s23
      %s26 = sphi 0, %s24
      %s34 = sphi 0, %s34
      %s36 = sphi 0, %s34
      %s37 = sphi 0, %s36
      %s51 = sphi 0, %s37
      %s59 = sphi 0, %s61
      %s62 = sphi 0, %s59
      %s63 = sphi 0, %s62
      %s79 = sphi 0, %s63
      %s83 = sphi 0, %s83
      %s85 = sphi 0, %s83
      %s86 = sphi 0, %s85
      %s100 = sphi 0, %s86
      %s104 = sphi 0, %s104
      %s106 = sphi 0, %s104
      %s107 = sphi 0, %s106
      %s121 = sphi 0, %s107
    $region4: #{tpu_custom_call.1} parent=1 // loop_header_branch
      %17 = sbr.rel (%p15) target = $region8
    $region5: #{tpu_custom_call.1} parent=1 // loop_body
      %s19 = ssub.s32 %s14, 1
      %s20 = ssub.s32 %s14, 2
      %s27 = sadd.s32 1, %s22
      %p28 = scmp.ge.s32.totalorder %s27, 1
      %s29 = scalar_select %p28, 0, %s27
      %s30 = sadd.s32 1, %s21
      %s31 = scalar_select %p28, %s30, %s21
      %p32 = scmp.ge.s32.totalorder %s31, 2
      %s33 = scalar_select %p32, 0, %s31
      %s35 = sadd.s32 %s34, 1
      %p38 = scmp.eq.s32.totalorder %s14, 1
      %p39 = scmp.ne.s32.totalorder %s34, %s36
      %p40 = scmp.eq.s32.totalorder %s14, 0
      %p41 = por %p39, %p40
      %p42 = scmp.ne.s32.totalorder %s34, %s36
      %p43 = scmp.eq.s32.totalorder %s19, 1
      %p44 = por %p42, %p43
      %p45 = scmp.ne.s32.totalorder %s36, %s37
      %p46 = scmp.eq.s32.totalorder %s19, 0
      %p47 = por %p45, %p46
      %p48 = scmp.ne.s32.totalorder %s36, %s37
      %p49 = scmp.eq.s32.totalorder %s20, 1
      %p50 = por %p48, %p49
      %p52 = scmp.ne.s32.totalorder %s37, %s51
      %p53 = scmp.eq.s32.totalorder %s20, 0
      %p54 = por %p52, %p53
      %s55 = ssub.s32 %s21, %s33
      %s56 = ssub.s32 %s22, %s29
      %s57 = sor.u32 %s55, %s56
      %p58 = scmp.eq.s32.totalorder %s57, 0
      %s60 = sadd.s32 %s59, 1
      %s61 = scalar_select %p58, %s59, %s60
      %p64 = pneg %p58
      %p65 = scmp.eq.s32.totalorder %s14, 1
      %p66 = por %p64, %p65
      %p67 = scmp.ne.s32.totalorder %s59, %s62
      %p68 = scmp.eq.s32.totalorder %s14, 0
      %p69 = por %p67, %p68
      %p70 = scmp.ne.s32.totalorder %s59, %s62
      %p71 = scmp.eq.s32.totalorder %s19, 1
      %p72 = por %p70, %p71
      %p73 = scmp.ne.s32.totalorder %s62, %s63
      %p74 = scmp.eq.s32.totalorder %s19, 0
      %p75 = por %p73, %p74
      %p76 = scmp.ne.s32.totalorder %s62, %s63
      %p77 = scmp.eq.s32.totalorder %s20, 1
      %p78 = por %p76, %p77
      %p80 = scmp.ne.s32.totalorder %s63, %s79
      %p81 = scmp.eq.s32.totalorder %s20, 0
      %p82 = por %p80, %p81
      %s84 = sadd.s32 %s83, 1
      %p87 = scmp.eq.s32.totalorder %s14, 1
      %p88 = scmp.ne.s32.totalorder %s83, %s85
      %p89 = scmp.eq.s32.totalorder %s14, 0
      %p90 = por %p88, %p89
      %p91 = scmp.ne.s32.totalorder %s83, %s85
      %p92 = scmp.eq.s32.totalorder %s19, 1
      %p93 = por %p91, %p92
      %p94 = scmp.ne.s32.totalorder %s85, %s86
      %p95 = scmp.eq.s32.totalorder %s19, 0
      %p96 = por %p94, %p95
      %p97 = scmp.ne.s32.totalorder %s85, %s86
      %p98 = scmp.eq.s32.totalorder %s20, 1
      %p99 = por %p97, %p98
      %p101 = scmp.ne.s32.totalorder %s86, %s100
      %p102 = scmp.eq.s32.totalorder %s20, 0
      %p103 = por %p101, %p102
      %s105 = sadd.s32 %s104, 1
      %p108 = scmp.eq.s32.totalorder %s14, 1
      %p109 = scmp.ne.s32.totalorder %s104, %s106
      %p110 = scmp.eq.s32.totalorder %s14, 0
      %p111 = por %p109, %p110
      %p112 = scmp.ne.s32.totalorder %s104, %s106
      %p113 = scmp.eq.s32.totalorder %s19, 1
      %p114 = por %p112, %p113
      %p115 = scmp.ne.s32.totalorder %s106, %s107
      %p116 = scmp.eq.s32.totalorder %s19, 0
      %p117 = por %p115, %p116
      %p118 = scmp.ne.s32.totalorder %s106, %s107
      %p119 = scmp.eq.s32.totalorder %s20, 1
      %p120 = por %p118, %p119
      %p122 = scmp.ne.s32.totalorder %s107, %s121
      %p123 = scmp.eq.s32.totalorder %s20, 0
      %p124 = por %p122, %p123
      %p125 = scmp.le.s32.totalorder 1, %s14
      %p126 = scmp.lt.s32.totalorder %s14, 3
      %p127 = pnand %p125, %p126
      %p128 = pneg %p127
      // Predicated region
      $region9: #{tpu_custom_call.1} parent=5 // pred_check
        _
      $region10: #{tpu_custom_call.1} parent=5 // pred_check_branch
        %130 = sbr.rel (%p127) target = $region12
      $region11: #{tpu_custom_call.1} parent=5 // pred_region
        %s131 = ssub.s32 %s14, 1
        // Predicated region
        $region13: #{tpu_custom_call.1} parent=11 // pred_check
          %p132 = pneg %p47
        $region14: #{tpu_custom_call.1} parent=11 // pred_check_branch
          %134 = sbr.rel (%p132) target = $region16
        $region15: #{tpu_custom_call.1} parent=11 // pred_region
          %s136 = ssub.s32 64, 64
          %137 = vsyncadd [#allocation3], %s136
          %s139 = sshll.u32 [#allocation2], 4
          %s140 = int_to_ptr.vmem [resolvable:$true] %s139
          %142 = dma.hbm_to_vmem [thread:$0]  %s0, 64, %s140, [#allocation3]
        $region16: #{tpu_custom_call.1} parent=11 // pred_fallthru
          _
      $region12: #{tpu_custom_call.1} parent=5 // pred_fallthru
        _
      %p143 = scmp.lt.s32.totalorder %s14, 2
      // Predicated region
      $region17: #{tpu_custom_call.1} parent=5 // pred_check
        %p144 = pneg %p143
      $region18: #{tpu_custom_call.1} parent=5 // pred_check_branch
        %146 = sbr.rel (%p144) target = $region20
      $region19: #{tpu_custom_call.1} parent=5 // pred_region
        // Predicated region
        $region21: #{tpu_custom_call.1} parent=19 // pred_check
          %p147 = pneg %p69
        $region22: #{tpu_custom_call.1} parent=19 // pred_check_branch
          %149 = sbr.rel (%p147) target = $region24
        $region23: #{tpu_custom_call.1} parent=19 // pred_region
          %s150 = sand.u32 %s59, 1
          %s151 = scalar_lea.sflag [#allocation5], %s150
          %s152 = sand.u32 %s59, 1
          %s153 = smul.addr %s152, 8
          %s154 = scalar_lea.vmem [#allocation4], %s153
          %s155 = smul.u32 2, %s22
          %s157 = ssub.s32 128, 128
          %158 = vsyncadd %s151, %s157
          %s159 = smul.addr %s21, 2
          %s160 = sadd.s32 %s155, %s159
          %s161 = smul.addr %s160, 64
          %s162 = scalar_lea.hbm %s1, %s161
          %s164 = sshll.u32 %s154, 4
          %s165 = int_to_ptr.vmem [resolvable:$true] %s164
          %167 = dma.hbm_to_vmem [thread:$0]  %s162, 128, %s165, %s151
        $region24: #{tpu_custom_call.1} parent=19 // pred_fallthru
          _
      $region20: #{tpu_custom_call.1} parent=5 // pred_fallthru
        _
      %p168 = scmp.le.s32.totalorder 1, %s14
      %p169 = scmp.lt.s32.totalorder %s14, 3
      %p170 = pnand %p168, %p169
      %p171 = pneg %p170
      // Predicated region
      $region25: #{tpu_custom_call.1} parent=5 // pred_check
        _
      $region26: #{tpu_custom_call.1} parent=5 // pred_check_branch
        %173 = sbr.rel (%p170) target = $region28
      $region27: #{tpu_custom_call.1} parent=5 // pred_region
        %s174 = ssub.s32 %s14, 1
        // Predicated region
        $region29: #{tpu_custom_call.1} parent=27 // pred_check
          %p175 = pneg %p47
        $region30: #{tpu_custom_call.1} parent=27 // pred_check_branch
          %177 = sbr.rel (%p175) target = $region32
        $region31: #{tpu_custom_call.1} parent=27 // pred_region
          %178 = dma.done [#allocation3], 64
        $region32: #{tpu_custom_call.1} parent=27 // pred_fallthru
          _
        %s179 = sand.u32 %s62, 1
        %s180 = scalar_lea.sflag [#allocation5], %s179
        %s181 = sand.u32 %s62, 1
        %s182 = smul.addr %s181, 8
        %s183 = scalar_lea.vmem [#allocation4], %s182
        // Predicated region
        $region33: #{tpu_custom_call.1} parent=27 // pred_check
          %p184 = pneg %p75
        $region34: #{tpu_custom_call.1} parent=27 // pred_check_branch
          %186 = sbr.rel (%p184) target = $region36
        $region35: #{tpu_custom_call.1} parent=27 // pred_region
          %187 = dma.done %s180, 128
        $region36: #{tpu_custom_call.1} parent=27 // pred_fallthru
          _
        %p188 = pneg %p47
        %p189 = pneg %p44
        %s190 = sand.u32 %s62, 1
        %s191 = scalar_lea.sflag [#allocation5], %s190
        %s192 = sand.u32 %s62, 1
        %s193 = smul.addr %s192, 8
        %s194 = scalar_lea.vmem [#allocation4], %s193
        %p195 = pneg %p75
        %p196 = pneg %p72
        %p197 = pneg %p96
        %p198 = pneg %p93
        %p199 = pneg %p117
        %p200 = pneg %p114
        %s201 = smul.u32 2, %s24
        %p202 = scmp.eq.s32.totalorder %s23, 0
        %p203 = scmp.eq.s32.totalorder %s24, 0
        %p204 = pnand %p202, %p203
        %p205 = pneg %p204
        // Predicated region
        $region37: #{tpu_custom_call.1} parent=27 // pred_check
          _
        $region38: #{tpu_custom_call.1} parent=27 // pred_check_branch
          %207 = sbr.rel (%p204) target = $region40
        $region39: #{tpu_custom_call.1} parent=27 // pred_region
          %vm208 = vcmask 3072
          %209 = vst.msk [vmem:[%s2] sm:$0xf] %vm208, 0.0
          %210 = vst.msk [vmem:[%s3] sm:$0xf] %vm208, 0.0
        $region40: #{tpu_custom_call.1} parent=27 // pred_fallthru
          _
        %v211 = vld [vmem:[%s183] sm:$0xff]
        %v212 = vld [vmem:[#allocation2] sm:$0xf]
        %214 = vset.pattern.permute.xlu0 0
        %215 = vperm.xlu0 %214, %v212
        %v216 = vpop.permute.xlu0 %215
        %v219 = vlaneseq
        %v220 = vshrl.u32 %v219, 7
        %v221 = vsub.s32 0, %v220
        %v222 = vrot.slane %v211, %v221
        %v223 = vlaneseq
        %v224 = vshrl.u32 %v223, 7
        %v225 = vsub.s32 4, %v224
        %v226 = vrot.slane %v211, %v225
        %v229 = vlaneseq
        %v230 = vshrl.u32 %v229, 7
        %v231 = vsub.s32 0, %v230
        %v232 = vrot.slane %v222, %v231
        %v233 = vlaneseq
        %v234 = vshrl.u32 %v233, 7
        %v235 = vsub.s32 0, %v234
        %v236 = vrot.slane %v226, %v235
        %v237 = vmul.f32 %v216, %v232
        %v238 = vmul.f32 %v216, %v236
        %239 = vset.pattern.permute.xlu0 1
        %240 = vperm.xlu0 %239, %v212
        %v241 = vpop.permute.xlu0 %240
        %v243 = vlaneseq
        %v244 = vshrl.u32 %v243, 7
        %v245 = vsub.s32 1, %v244
        %v246 = vrot.slane %v211, %v245
        %v247 = vlaneseq
        %v248 = vshrl.u32 %v247, 7
        %v249 = vsub.s32 5, %v248
        %v250 = vrot.slane %v211, %v249
        %v253 = vlaneseq
        %v254 = vshrl.u32 %v253, 7
        %v255 = vsub.s32 1, %v254
        %v256 = vrot.slane %v246, %v255
        %v257 = vlaneseq
        %v258 = vshrl.u32 %v257, 7
        %v259 = vsub.s32 1, %v258
        %v260 = vrot.slane %v250, %v259
        %v261 = vmul.f32 %v241, %v256
        %v262 = vmul.f32 %v241, %v260
        %v263 = vadd.f32 %v237, %v261
        %v264 = vadd.f32 %v238, %v262
        %265 = vset.pattern.permute.xlu0 2
        %266 = vperm.xlu0 %265, %v212
        %v267 = vpop.permute.xlu0 %266
        %v269 = vlaneseq
        %v270 = vshrl.u32 %v269, 7
        %v271 = vsub.s32 2, %v270
        %v272 = vrot.slane %v211, %v271
        %v273 = vlaneseq
        %v274 = vshrl.u32 %v273, 7
        %v275 = vsub.s32 6, %v274
        %v276 = vrot.slane %v211, %v275
        %v279 = vlaneseq
        %v280 = vshrl.u32 %v279, 7
        %v281 = vsub.s32 2, %v280
        %v282 = vrot.slane %v272, %v281
        %v283 = vlaneseq
        %v284 = vshrl.u32 %v283, 7
        %v285 = vsub.s32 2, %v284
        %v286 = vrot.slane %v276, %v285
        %v287 = vmul.f32 %v267, %v282
        %v288 = vmul.f32 %v267, %v286
        %v289 = vadd.f32 %v263, %v287
        %v290 = vadd.f32 %v264, %v288
        %291 = vset.pattern.permute.xlu0 3
        %292 = vperm.xlu0 %291, %v212
        %v293 = vpop.permute.xlu0 %292
        %v295 = vlaneseq
        %v296 = vshrl.u32 %v295, 7
        %v297 = vsub.s32 3, %v296
        %v298 = vrot.slane %v211, %v297
        %v299 = vlaneseq
        %v300 = vshrl.u32 %v299, 7
        %v301 = vsub.s32 7, %v300
        %v302 = vrot.slane %v211, %v301
        %v305 = vlaneseq
        %v306 = vshrl.u32 %v305, 7
        %v307 = vsub.s32 3, %v306
        %v308 = vrot.slane %v298, %v307
        %v309 = vlaneseq
        %v310 = vshrl.u32 %v309, 7
        %v311 = vsub.s32 3, %v310
        %v312 = vrot.slane %v302, %v311
        %v313 = vmul.f32 %v293, %v308
        %v314 = vmul.f32 %v293, %v312
        %v315 = vadd.f32 %v289, %v313
        %v316 = vadd.f32 %v290, %v314
        %v317 = vld [vmem:[%s2] sm:$0xf]
        %vm318 = vcmask 1043456
        %v319 = vsel %vm318, %v315, 0.0
        %v320 = vsel %vm318, %v316, 0.0
        %v321 = vadd.f32 %v319, %v320
        %322 = vadd.xlane.f32.xlu0 %v321
        %v323 = vpop.xlane.xlu0 %322
        %v324 = vadd.f32 %v317, %v323
        %vm325 = vcmask 3072
        %326 = vst.msk [vmem:[%s2] sm:$0xf] %vm325, %v324
        %v327 = vld [vmem:[%s3] sm:$0xf]
        %v328 = vmul.f32 %v315, %v315
        %v329 = vmul.f32 %v316, %v316
        %v330 = vsel %vm318, %v328, 0.0
        %v331 = vsel %vm318, %v329, 0.0
        %v332 = vadd.f32 %v330, %v331
        %333 = vadd.xlane.f32.xlu0 %v332
        %v334 = vpop.xlane.xlu0 %333
        %v335 = vadd.f32 %v327, %v334
        %336 = vst.msk [vmem:[%s3] sm:$0xf] %vm325, %v335
        // Predicated region
        $region41: #{tpu_custom_call.1} parent=27 // pred_check
          %p337 = pneg %p93
        $region42: #{tpu_custom_call.1} parent=27 // pred_check_branch
          %339 = sbr.rel (%p337) target = $region44
        $region43: #{tpu_custom_call.1} parent=27 // pred_region
          _
        $region44: #{tpu_custom_call.1} parent=27 // pred_fallthru
          _
        // Predicated region
        $region45: #{tpu_custom_call.1} parent=27 // pred_check
          %p340 = pneg %p114
        $region46: #{tpu_custom_call.1} parent=27 // pred_check_branch
          %342 = sbr.rel (%p340) target = $region48
        $region47: #{tpu_custom_call.1} parent=27 // pred_region
          _
        $region48: #{tpu_custom_call.1} parent=27 // pred_fallthru
          _
        // Predicated region
        $region49: #{tpu_custom_call.1} parent=27 // pred_check
          %p343 = pneg %p93
        $region50: #{tpu_custom_call.1} parent=27 // pred_check_branch
          %345 = sbr.rel (%p343) target = $region52
        $region51: #{tpu_custom_call.1} parent=27 // pred_region
          _
        $region52: #{tpu_custom_call.1} parent=27 // pred_fallthru
          _
        // Predicated region
        $region53: #{tpu_custom_call.1} parent=27 // pred_check
          %p346 = pneg %p114
        $region54: #{tpu_custom_call.1} parent=27 // pred_check_branch
          %348 = sbr.rel (%p346) target = $region56
        $region55: #{tpu_custom_call.1} parent=27 // pred_region
          _
        $region56: #{tpu_custom_call.1} parent=27 // pred_fallthru
          _
      $region28: #{tpu_custom_call.1} parent=5 // pred_fallthru
        _
      %p349 = scmp.le.s32.totalorder 2, %s14
      // Predicated region
      $region57: #{tpu_custom_call.1} parent=5 // pred_check
        %p350 = pneg %p349
      $region58: #{tpu_custom_call.1} parent=5 // pred_check_branch
        %352 = sbr.rel (%p350) target = $region60
      $region59: #{tpu_custom_call.1} parent=5 // pred_region
        %s353 = ssub.s32 %s14, 2
      $region60: #{tpu_custom_call.1} parent=5 // pred_fallthru
        _
    $region6: #{tpu_custom_call.1} parent=1 // loop_footer
      %s18 = sadd.s32 1, %s14
    $region7: #{tpu_custom_call.1} parent=1 // loop_footer_branch
      %13 = sbr.rel target = $region3
    $region8: #{tpu_custom_call.1} parent=1 // loop_exit
      _
    %354 = vsyncpa [#allocation3], 1
    %s355 = scalar_lea.sflag [#allocation3], 1
    %356 = vsyncpa %s355, 1
    %357 = vsyncpa [#allocation5], 1
    %s358 = scalar_lea.sflag [#allocation5], 1
    %359 = vsyncpa %s358, 1

</llo_original>
